<compile_context>
chip_gen: v6e
topology: v6e:2x2x1
jax: 0.10.0
libtpu: 0.0.40
codegen_flags: <defaults>
</compile_context>

<pallas_src>
import functools

import jax
import jax.numpy as jnp
from jax.experimental import pallas as pl
from jax.experimental.pallas import tpu as pltpu


def _mask_kernel(x_ref, w1_ref, b1_ref, w2_ref, b2_ref, out_ref):
    # x_ref: [tile_N, T]  (BatchNorm already folded into w1/b1)
    x = x_ref[...].astype(jnp.float32)

    # MLP: Linear -> ReLU -> Linear -> ReLU  (MXU)
    h = jnp.dot(x, w1_ref[...], preferred_element_type=jnp.float32) + b1_ref[...]
    h = jnp.maximum(h, 0.0)                                   # [tile_N, H]
    y = jnp.dot(h, w2_ref[...], preferred_element_type=jnp.float32) + b2_ref[...]
    y = jnp.maximum(y, 0.0)                                   # [tile_N, C]

    # softmax over clusters (exact reciprocal to preserve 1e-5 test tolerance)
    m = jnp.max(y, axis=-1, keepdims=True)
    e = jnp.exp(y - m)
    raw = e * pl.reciprocal(jnp.sum(e, axis=-1, keepdims=True), approx=False)

    # transpose the *small* tensor [tile_N, C] -> [C, tile_N] (XLU has slack)
    masks = jnp.transpose(raw)                                # [C, tile_N]
    out_ref[0] = masks.astype(out_ref.dtype)                  # masks
    out_ref[1] = (1.0 - masks).astype(out_ref.dtype)          # complement


def _round_up(x, m):
    return ((x + m - 1) // m) * m


@functools.partial(jax.jit, static_argnames=("max_tile_n",))
def kernel_mask_encoder(pos_enc, gamma, beta, w1, b1, w2, b2, *, max_tile_n=4096):
    """pos_enc: [N, T] float32. Returns (masks [C, N], complement_masks [C, N])."""
    N, T = pos_enc.shape
    H = w1.shape[1]
    C = w2.shape[1]

    # ---- Fold BatchNorm1d (training-mode batch stats over the FULL N) into
    #      the first Linear: xn = x*scale + shift, scale = gamma*rsqrt(var+eps),
    #      shift = beta - mean*scale  =>  xn @ w1 + b1 = x @ w1_eff + b1_eff.
    x32 = pos_enc.astype(jnp.float32)
    mean = jnp.mean(x32, axis=0, keepdims=True)                       # [1, T]
    var = jnp.mean((x32 - mean) ** 2, axis=0, keepdims=True)          # [1, T] biased
    scale = gamma * jax.lax.rsqrt(var + 1e-5)                         # [1, T]
    shift = beta - mean * scale                                       # [1, T]
    w1_eff = w1 * scale.reshape(T, 1)                                 # [T, H]
    b1_eff = b1 + shift @ w1                                          # [1, H]

    # ---- Tile over N (lane-dense, 128-aligned output tiles) and pad.
    tile_n = min(max_tile_n, _round_up(N, 128))
    n_pad = _round_up(N, tile_n)
    x_pad = jnp.zeros((n_pad, T), jnp.float32).at[:N].set(x32)
    grid = (n_pad // tile_n,)

    weight_bytes = 4 * (T * H + H + H * C + C)
    cost = pl.CostEstimate(
        flops=2 * n_pad * (T * H + H * C),
        transcendentals=n_pad * C,
        bytes_accessed=n_pad * T * 4 + 2 * C * n_pad * 4 + weight_bytes,
    )

    out = pl.pallas_call(
        _mask_kernel,
        out_shape=jax.ShapeDtypeStruct((2, C, n_pad), jnp.float32),
        grid=grid,
        in_specs=[
            pl.BlockSpec((tile_n, T), lambda i: (i, 0)),   # pos_enc tile
            pl.BlockSpec((T, H), lambda i: (0, 0)),        # w1_eff (resident)
            pl.BlockSpec((1, H), lambda i: (0, 0)),        # b1_eff
            pl.BlockSpec((H, C), lambda i: (0, 0)),        # w2
            pl.BlockSpec((1, C), lambda i: (0, 0)),        # b2
        ],
        out_specs=pl.BlockSpec((2, C, tile_n), lambda i: (0, 0, i)),
        compiler_params=pltpu.CompilerParams(
            dimension_semantics=("parallel",),             # v7x: shard over 2 TCs
        ),
        cost_estimate=cost,
    )(x_pad, w1_eff, b1_eff, w2, b2)

    masks = out[0, :, :N]
    complement = out[1, :, :N]
    return masks, complement


def _reference(pos_enc, gamma, beta, w1, b1, w2, b2):
    mean = jnp.mean(pos_enc, axis=0, keepdims=True)
    var = jnp.mean((pos_enc - mean) ** 2, axis=0, keepdims=True)
    xn = (pos_enc - mean) / jnp.sqrt(var + 1e-5) * gamma + beta
    h = jnp.maximum(xn @ w1 + b1, 0.0)
    y = jnp.maximum(h @ w2 + b2, 0.0)
    raw = jax.nn.softmax(y, axis=-1)
    masks = raw.T
    return masks, 1.0 - masks


if __name__ == "__main__":
    # Shapes implied by the module: N nodes, T=num_rw_steps PE features each.
    N = 64            # number of nodes
    T = 8             # num_rw_steps
    dim_pe = 16
    H = 2 * dim_pe    # hidden width of the 2-layer MLP
    C = 8             # cfg.gnn.num_clusters

    key = jax.random.PRNGKey(0)
    k_x, k_w1, k_b1, k_w2, k_b2 = jax.random.split(key, 5)

    pos_enc = jax.random.normal(k_x, (N, T), dtype=jnp.float32)

    # BatchNorm1d default init: gamma=1, beta=0 (kept [1, T] for broadcasting).
    gamma = jnp.ones((1, T), dtype=jnp.float32)
    beta = jnp.zeros((1, T), dtype=jnp.float32)

    # Deterministic Linear params (synthetic init, PyTorch-like scale).
    w1 = jax.random.uniform(k_w1, (T, H), jnp.float32, -1.0, 1.0) / jnp.sqrt(T)
    b1 = jax.random.uniform(k_b1, (1, H), jnp.float32, -1.0, 1.0) / jnp.sqrt(T)
    w2 = jax.random.uniform(k_w2, (H, C), jnp.float32, -1.0, 1.0) / jnp.sqrt(H)
    b2 = jax.random.uniform(k_b2, (1, C), jnp.float32, -1.0, 1.0) / jnp.sqrt(H)

    masks, comp = kernel_mask_encoder(pos_enc, gamma, beta, w1, b1, w2, b2)
    jax.block_until_ready((masks, comp))

    ref_masks, ref_comp = _reference(pos_enc, gamma, beta, w1, b1, w2, b2)
    assert masks.shape == (C, N) and comp.shape == (C, N)
    assert jnp.allclose(masks, ref_masks, atol=1e-5, rtol=1e-4)
    assert jnp.allclose(comp, ref_comp, atol=1e-5, rtol=1e-4)

    print("KERNEL_OK")
</pallas_src>

<mosaic_0001>
module attributes {stable_mosaic.version = 11 : i64} {
  func.func @_mask_kernel(%arg0: i32, %arg1: memref<128x8xf32, #tpu.memory_space<vmem>>, %arg2: memref<8x32xf32, #tpu.memory_space<vmem>>, %arg3: memref<1x32xf32, #tpu.memory_space<vmem>>, %arg4: memref<32x8xf32, #tpu.memory_space<vmem>>, %arg5: memref<1x8xf32, #tpu.memory_space<vmem>>, %arg6: memref<2x8x128xf32, #tpu.memory_space<vmem>>) attributes {dimension_semantics = [#tpu.dimension_semantics<parallel>], iteration_bounds = array<i64: 1>, scalar_prefetch = 0 : i64, scratch_operands = 0 : i64, tpu.core_type = #tpu.core_type<tc>, window_params = [{transform_indices = @transform_0, window_bounds = array<i64: 128, 8>}, {pipeline_mode = #tpu.pipeline_mode<synchronous>, transform_indices = @transform_1, window_bounds = array<i64: 8, 32>}, {pipeline_mode = #tpu.pipeline_mode<synchronous>, transform_indices = @transform_2, window_bounds = array<i64: 1, 32>}, {pipeline_mode = #tpu.pipeline_mode<synchronous>, transform_indices = @transform_3, window_bounds = array<i64: 32, 8>}, {pipeline_mode = #tpu.pipeline_mode<synchronous>, transform_indices = @transform_4, window_bounds = array<i64: 1, 8>}, {transform_indices = @transform_5, window_bounds = array<i64: 2, 8, 128>}]} {
    %c0 = arith.constant 0 : index
    %c0_0 = arith.constant 0 : index
    %0 = vector.load %arg1[%c0, %c0_0] : memref<128x8xf32, #tpu.memory_space<vmem>>, vector<128x8xf32>
    %c0_1 = arith.constant 0 : index
    %c0_2 = arith.constant 0 : index
    %1 = vector.load %arg2[%c0_1, %c0_2] : memref<8x32xf32, #tpu.memory_space<vmem>>, vector<8x32xf32>
    %cst = arith.constant dense<0.000000e+00> : vector<128x32xf32>
    %2 = tpu.matmul %0, %1, %cst {dimension_numbers = #tpu.dot_dimension_numbers<[1], [0], [0], [1], [0, 0, 1, 1], [], []>} : vector<128x8xf32>, vector<8x32xf32>, vector<128x32xf32> -> vector<128x32xf32>
    %c0_3 = arith.constant 0 : index
    %c0_4 = arith.constant 0 : index
    %3 = vector.load %arg3[%c0_3, %c0_4] : memref<1x32xf32, #tpu.memory_space<vmem>>, vector<1x32xf32>
    %4 = vector.broadcast %3 : vector<1x32xf32> to vector<128x32xf32>
    %5 = arith.addf %2, %4 : vector<128x32xf32>
    %cst_5 = arith.constant 0.000000e+00 : f32
    %6 = vector.broadcast %cst_5 : f32 to vector<128x32xf32>
    %7 = arith.maximumf %5, %6 : vector<128x32xf32>
    %c0_6 = arith.constant 0 : index
    %c0_7 = arith.constant 0 : index
    %8 = vector.load %arg4[%c0_6, %c0_7] : memref<32x8xf32, #tpu.memory_space<vmem>>, vector<32x8xf32>
    %cst_8 = arith.constant dense<0.000000e+00> : vector<128x8xf32>
    %9 = tpu.matmul %7, %8, %cst_8 {dimension_numbers = #tpu.dot_dimension_numbers<[1], [0], [0], [1], [0, 0, 1, 1], [], []>} : vector<128x32xf32>, vector<32x8xf32>, vector<128x8xf32> -> vector<128x8xf32>
    %c0_9 = arith.constant 0 : index
    %c0_10 = arith.constant 0 : index
    %10 = vector.load %arg5[%c0_9, %c0_10] : memref<1x8xf32, #tpu.memory_space<vmem>>, vector<1x8xf32>
    %11 = vector.broadcast %10 : vector<1x8xf32> to vector<128x8xf32>
    %12 = arith.addf %9, %11 : vector<128x8xf32>
    %cst_11 = arith.constant 0.000000e+00 : f32
    %13 = vector.broadcast %cst_11 : f32 to vector<128x8xf32>
    %14 = arith.maximumf %12, %13 : vector<128x8xf32>
    %cst_12 = arith.constant dense<0xFF800000> : vector<128xf32>
    %15 = vector.multi_reduction <maximumf>, %14, %cst_12 [1] : vector<128x8xf32> to vector<128xf32>
    %16 = vector.shape_cast %15 : vector<128xf32> to vector<128x1xf32>
    %17 = vector.broadcast %16 : vector<128x1xf32> to vector<128x8xf32>
    %18 = arith.subf %14, %17 : vector<128x8xf32>
    %19 = math.exp %18 : vector<128x8xf32>
    %cst_13 = arith.constant dense<0.000000e+00> : vector<128xf32>
    %20 = vector.multi_reduction <add>, %19, %cst_13 [1] : vector<128x8xf32> to vector<128xf32>
    %21 = vector.shape_cast %20 : vector<128xf32> to vector<128x1xf32>
    %22 = tpu.reciprocal %21 : vector<128x1xf32> -> vector<128x1xf32>
    %23 = vector.broadcast %22 : vector<128x1xf32> to vector<128x8xf32>
    %24 = arith.mulf %19, %23 : vector<128x8xf32>
    %25 = tpu.transpose %24, [1, 0] : vector<128x8xf32> -> vector<8x128xf32>
    %c0_14 = arith.constant 0 : index
    %c0_15 = arith.constant 0 : index
    %c0_16 = arith.constant 0 : index
    %26 = vector.load %arg6[%c0_14, %c0_15, %c0_16] : memref<2x8x128xf32, #tpu.memory_space<vmem>>, vector<1x8x128xf32>
    %27 = vector.shape_cast %26 : vector<1x8x128xf32> to vector<8x128xf32>
    %28 = vector.shape_cast %25 : vector<8x128xf32> to vector<1x8x128xf32>
    tpu.vector_store %arg6[%c0_14, %c0_15, %c0_16], %28 {strides = array<i32>} : memref<2x8x128xf32, #tpu.memory_space<vmem>>, vector<1x8x128xf32>,
    %cst_17 = arith.constant 1.000000e+00 : f32
    %29 = vector.broadcast %cst_17 : f32 to vector<8x128xf32>
    %30 = arith.subf %29, %25 : vector<8x128xf32>
    %c1 = arith.constant 1 : index
    %c0_18 = arith.constant 0 : index
    %c0_19 = arith.constant 0 : index
    %31 = vector.load %arg6[%c1, %c0_18, %c0_19] : memref<2x8x128xf32, #tpu.memory_space<vmem>>, vector<1x8x128xf32>
    %32 = vector.shape_cast %31 : vector<1x8x128xf32> to vector<8x128xf32>
    %33 = vector.shape_cast %30 : vector<8x128xf32> to vector<1x8x128xf32>
    tpu.vector_store %arg6[%c1, %c0_18, %c0_19], %33 {strides = array<i32>} : memref<2x8x128xf32, #tpu.memory_space<vmem>>, vector<1x8x128xf32>,
    return
  }
  func.func @transform_0(%arg0: i32) -> (i32, i32) {
    %c0_i32 = arith.constant 0 : i32
    %c0_i32_0 = arith.constant 0 : i32
    return %arg0, %c0_i32 : i32, i32
  }
  func.func @transform_1(%arg0: i32) -> (i32, i32) {
    %c0_i32 = arith.constant 0 : i32
    %c0_i32_0 = arith.constant 0 : i32
    %c0_i32_1 = arith.constant 0 : i32
    return %c0_i32, %c0_i32_0 : i32, i32
  }
  func.func @transform_2(%arg0: i32) -> (i32, i32) {
    %c0_i32 = arith.constant 0 : i32
    %c0_i32_0 = arith.constant 0 : i32
    %c0_i32_1 = arith.constant 0 : i32
    return %c0_i32, %c0_i32_0 : i32, i32
  }
  func.func @transform_3(%arg0: i32) -> (i32, i32) {
    %c0_i32 = arith.constant 0 : i32
    %c0_i32_0 = arith.constant 0 : i32
    %c0_i32_1 = arith.constant 0 : i32
    return %c0_i32, %c0_i32_0 : i32, i32
  }
  func.func @transform_4(%arg0: i32) -> (i32, i32) {
    %c0_i32 = arith.constant 0 : i32
    %c0_i32_0 = arith.constant 0 : i32
    %c0_i32_1 = arith.constant 0 : i32
    return %c0_i32, %c0_i32_0 : i32, i32
  }
  func.func @transform_5(%arg0: i32) -> (i32, i32, i32) {
    %c0_i32 = arith.constant 0 : i32
    %c0_i32_0 = arith.constant 0 : i32
    %c0_i32_1 = arith.constant 0 : i32
    return %c0_i32, %c0_i32_0, %arg0 : i32, i32, i32
  }
}

</mosaic_0001>

<llo_original>
// kernel: kernel_mask_encoder.1
$region0: #{kernel_mask_encoder.1}
  #allocation0 [shape = 'u32[]', space=smem, size = 0x4, offset = 0x4, fixed_abs, tag = 'smem constant byte address 0x4 - core index']
  #allocation1 [shape = 'u32[144,128]{1,0:T(1,128)}', space=vmem, size = 0x12000, scoped, tag = 'internal scratch']
  %s0 = inlined_call_operand.vmem [shape: f32[128,8], index: 0, kind: input, shape index: {}]
  %s1 = inlined_call_operand.vmem [shape: f32[8,32], index: 1, kind: input, shape index: {}]
  %s2 = inlined_call_operand.vmem [shape: f32[1,32], index: 2, kind: input, shape index: {}]
  %s3 = inlined_call_operand.vmem [shape: f32[32,8], index: 3, kind: input, shape index: {}]
  %s4 = inlined_call_operand.vmem [shape: f32[1,8], index: 4, kind: input, shape index: {}]
  %s5 = inlined_call_operand.vmem [shape: f32[2,8,128], index: 5, kind: output, shape index: {}]
  %s6 = sld [smem:[#allocation0]]
  $region30: #{kernel_mask_encoder.1} parent=0
    _
  %s8 = ssub.s32 1, %s6
  %s9 = scalar_select 0, %s8, %s6
  // Predicated region
  $region2: #{kernel_mask_encoder.1} parent=0 // pred_check
    _
  $region3: #{kernel_mask_encoder.1} parent=0 // pred_check_branch
    %11 = sbr.rel (0) target = $region5
  $region4: #{kernel_mask_encoder.1} parent=0 // pred_region
    _
  $region5: #{kernel_mask_encoder.1} parent=0 // pred_fallthru
    _
  // Predicated region
  $region6: #{kernel_mask_encoder.1} parent=0 // pred_check
    _
  $region7: #{kernel_mask_encoder.1} parent=0 // pred_check_branch
    %13 = sbr.rel (0) target = $region9
  $region8: #{kernel_mask_encoder.1} parent=0 // pred_region
    _
  $region9: #{kernel_mask_encoder.1} parent=0 // pred_fallthru
    _
  // Predicated region
  $region10: #{kernel_mask_encoder.1} parent=0 // pred_check
    _
  $region11: #{kernel_mask_encoder.1} parent=0 // pred_check_branch
    %15 = sbr.rel (0) target = $region13
  $region12: #{kernel_mask_encoder.1} parent=0 // pred_region
    _
  $region13: #{kernel_mask_encoder.1} parent=0 // pred_fallthru
    _
  // Predicated region
  $region14: #{kernel_mask_encoder.1} parent=0 // pred_check
    _
  $region15: #{kernel_mask_encoder.1} parent=0 // pred_check_branch
    %17 = sbr.rel (0) target = $region17
  $region16: #{kernel_mask_encoder.1} parent=0 // pred_region
    _
  $region17: #{kernel_mask_encoder.1} parent=0 // pred_fallthru
    _
  // Predicated region
  $region18: #{kernel_mask_encoder.1} parent=0 // pred_check
    _
  $region19: #{kernel_mask_encoder.1} parent=0 // pred_check_branch
    %19 = sbr.rel (0) target = $region21
  $region20: #{kernel_mask_encoder.1} parent=0 // pred_region
    _
  $region21: #{kernel_mask_encoder.1} parent=0 // pred_fallthru
    _
  %v20 = vld [vmem:[%s0] sm:$0xff]
  %v21 = vld [vmem:[%s0 + $0x8] sm:$0xff]
  %v22 = vld [vmem:[%s0 + $0x10] sm:$0xff]
  %v23 = vld [vmem:[%s0 + $0x18] sm:$0xff]
  %v24 = vld [vmem:[%s0 + $0x20] sm:$0xff]
  %v25 = vld [vmem:[%s0 + $0x28] sm:$0xff]
  %v26 = vld [vmem:[%s0 + $0x30] sm:$0xff]
  %v27 = vld [vmem:[%s0 + $0x38] sm:$0xff]
  %v28 = vld [vmem:[%s0 + $0x40] sm:$0xff]
  %v29 = vld [vmem:[%s0 + $0x48] sm:$0xff]
  %v30 = vld [vmem:[%s0 + $0x50] sm:$0xff]
  %v31 = vld [vmem:[%s0 + $0x58] sm:$0xff]
  %v32 = vld [vmem:[%s0 + $0x60] sm:$0xff]
  %v33 = vld [vmem:[%s0 + $0x68] sm:$0xff]
  %v34 = vld [vmem:[%s0 + $0x70] sm:$0xff]
  %v35 = vld [vmem:[%s0 + $0x78] sm:$0xff]
  %v36 = vld [vmem:[%s1] sm:$0xff]
  %v37 = vld [vmem:[%s2] sm:$0x1]
  %v39 = vlaneseq
  %v40 = vshrl.u32 %v39, 7
  %v41 = vsub.s32 0, %v40
  %v42 = vrot.slane %v37, %v41
  %vm44 = vcmask 64512
  %v46 = vsel %vm44, %v20, 0
  %v49 = vsel %vm44, %v21, 0
  %v52 = vsel %vm44, %v22, 0
  %v55 = vsel %vm44, %v23, 0
  %v58 = vsel %vm44, %v24, 0
  %v61 = vsel %vm44, %v25, 0
  %v64 = vsel %vm44, %v26, 0
  %v67 = vsel %vm44, %v27, 0
  %v70 = vsel %vm44, %v28, 0
  %v73 = vsel %vm44, %v29, 0
  %v76 = vsel %vm44, %v30, 0
  %v79 = vsel %vm44, %v31, 0
  %v82 = vsel %vm44, %v32, 0
  %v85 = vsel %vm44, %v33, 0
  %v88 = vsel %vm44, %v34, 0
  %v91 = vsel %vm44, %v35, 0
  %93 = vmatprep.subr.mxu0 0.0
  %94 = vmatpush1.msra.mxu0 0.0
  %95 = vmatprep.subr.mxu0 0.0
  %96 = vmatpush1.msra.mxu0 0.0
  %97 = vmatprep.subr.mxu0 0.0
  %98 = vmatpush1.msra.mxu0 0.0
  %99 = vmatprep.subr.mxu0 0.0
  %100 = vmatpush1.msra.mxu0 0.0
  %101 = vmatprep.subr.mxu0 0.0
  %102 = vmatpush1.msra.mxu0 0.0
  %103 = vmatprep.subr.mxu0 0.0
  %104 = vmatpush1.msra.mxu0 0.0
  %105 = vmatprep.subr.mxu0 0.0
  %106 = vmatpush1.msra.mxu0 0.0
  %107 = vmatprep.subr.mxu0 0.0
  %108 = vmatpush1.msra.mxu0 0.0
  %109 = vmatprep.subr.mxu0 0.0
  %110 = vmatpush1.msra.mxu0 0.0
  %111 = vmatprep.subr.mxu0 0.0
  %112 = vmatpush1.msra.mxu0 0.0
  %113 = vmatprep.subr.mxu0 0.0
  %114 = vmatpush1.msra.mxu0 0.0
  %115 = vmatprep.subr.mxu0 0.0
  %116 = vmatpush1.msra.mxu0 0.0
  %117 = vmatprep.subr.mxu0 0.0
  %118 = vmatpush1.msra.mxu0 0.0
  %119 = vmatprep.subr.mxu0 0.0
  %120 = vmatpush1.msra.mxu0 0.0
  %121 = vmatprep.subr.mxu0 0.0
  %122 = vmatpush1.msra.mxu0 0.0
  %123 = vmatprep.subr.mxu0 0.0
  %124 = vmatpush1.msra.mxu0 %v36
  %125 = vmatprep.subr.mxu0 0.0
  %126 = vmatpush2.msra.mxu0 0.0
  %127 = vmatprep.subr.mxu0 0.0
  %128 = vmatpush2.msra.mxu0 0.0
  %129 = vmatprep.subr.mxu0 0.0
  %130 = vmatpush2.msra.mxu0 0.0
  %131 = vmatprep.subr.mxu0 0.0
  %132 = vmatpush2.msra.mxu0 0.0
  %133 = vmatprep.subr.mxu0 0.0
  %134 = vmatpush2.msra.mxu0 0.0
  %135 = vmatprep.subr.mxu0 0.0
  %136 = vmatpush2.msra.mxu0 0.0
  %137 = vmatprep.subr.mxu0 0.0
  %138 = vmatpush2.msra.mxu0 0.0
  %139 = vmatprep.subr.mxu0 0.0
  %140 = vmatpush2.msra.mxu0 0.0
  %141 = vmatprep.subr.mxu0 0.0
  %142 = vmatpush2.msra.mxu0 0.0
  %143 = vmatprep.subr.mxu0 0.0
  %144 = vmatpush2.msra.mxu0 0.0
  %145 = vmatprep.subr.mxu0 0.0
  %146 = vmatpush2.msra.mxu0 0.0
  %147 = vmatprep.subr.mxu0 0.0
  %148 = vmatpush2.msra.mxu0 0.0
  %149 = vmatprep.subr.mxu0 0.0
  %150 = vmatpush2.msra.mxu0 0.0
  %151 = vmatprep.subr.mxu0 0.0
  %152 = vmatpush2.msra.mxu0 0.0
  %153 = vmatprep.subr.mxu0 0.0
  %154 = vmatpush2.msra.mxu0 0.0
  %155 = vmatprep.subr.mxu0 0.0
  %156 = vmatpush2.msra.mxu0 0.0
  %157 = vmatprep.mubr.f32.mxu0 0.0
  %158 = vmatmul.mubr.f32.gmra.mxu0 %v46
  %v159 = vpop.f32.mrf.mxu0
  %v160 = vadd.f32 %v42, %v159
  %v161 = vpop.f32.mrf.mxu0
  %162 = vmatprep.mubr.f32.mxu0 0.0
  %163 = vmatmul.mubr.f32.gmra.mxu0 %v49
  %v164 = vpop.f32.mrf.mxu0
  %v165 = vadd.f32 %v42, %v164
  %v166 = vpop.f32.mrf.mxu0
  %167 = vmatprep.mubr.f32.mxu0 0.0
  %168 = vmatmul.mubr.f32.gmra.mxu0 %v52
  %v169 = vpop.f32.mrf.mxu0
  %v170 = vadd.f32 %v42, %v169
  %v171 = vpop.f32.mrf.mxu0
  %172 = vmatprep.mubr.f32.mxu0 0.0
  %173 = vmatmul.mubr.f32.gmra.mxu0 %v55
  %v174 = vpop.f32.mrf.mxu0
  %v175 = vadd.f32 %v42, %v174
  %v176 = vpop.f32.mrf.mxu0
  %177 = vmatprep.mubr.f32.mxu0 0.0
  %178 = vmatmul.mubr.f32.gmra.mxu0 %v58
  %v179 = vpop.f32.mrf.mxu0
  %v180 = vadd.f32 %v42, %v179
  %v181 = vpop.f32.mrf.mxu0
  %182 = vmatprep.mubr.f32.mxu0 0.0
  %183 = vmatmul.mubr.f32.gmra.mxu0 %v61
  %v184 = vpop.f32.mrf.mxu0
  %v185 = vadd.f32 %v42, %v184
  %v186 = vpop.f32.mrf.mxu0
  %187 = vmatprep.mubr.f32.mxu0 0.0
  %188 = vmatmul.mubr.f32.gmra.mxu0 %v64
  %v189 = vpop.f32.mrf.mxu0
  %v190 = vadd.f32 %v42, %v189
  %v191 = vpop.f32.mrf.mxu0
  %192 = vmatprep.mubr.f32.mxu0 0.0
  %193 = vmatmul.mubr.f32.gmra.mxu0 %v67
  %v194 = vpop.f32.mrf.mxu0
  %v195 = vadd.f32 %v42, %v194
  %v196 = vpop.f32.mrf.mxu0
  %197 = vmatprep.mubr.f32.mxu0 0.0
  %198 = vmatmul.mubr.f32.gmra.mxu0 %v70
  %v199 = vpop.f32.mrf.mxu0
  %v200 = vadd.f32 %v42, %v199
  %v201 = vpop.f32.mrf.mxu0
  %202 = vmatprep.mubr.f32.mxu0 0.0
  %203 = vmatmul.mubr.f32.gmra.mxu0 %v73
  %v204 = vpop.f32.mrf.mxu0
  %v205 = vadd.f32 %v42, %v204
  %v206 = vpop.f32.mrf.mxu0
  %207 = vmatprep.mubr.f32.mxu0 0.0
  %208 = vmatmul.mubr.f32.gmra.mxu0 %v76
  %v209 = vpop.f32.mrf.mxu0
  %v210 = vadd.f32 %v42, %v209
  %v211 = vpop.f32.mrf.mxu0
  %212 = vmatprep.mubr.f32.mxu0 0.0
  %213 = vmatmul.mubr.f32.gmra.mxu0 %v79
  %v214 = vpop.f32.mrf.mxu0
  %v215 = vadd.f32 %v42, %v214
  %v216 = vpop.f32.mrf.mxu0
  %217 = vmatprep.mubr.f32.mxu0 0.0
  %218 = vmatmul.mubr.f32.gmra.mxu0 %v82
  %v219 = vpop.f32.mrf.mxu0
  %v220 = vadd.f32 %v42, %v219
  %v221 = vpop.f32.mrf.mxu0
  %222 = vmatprep.mubr.f32.mxu0 0.0
  %223 = vmatmul.mubr.f32.gmra.mxu0 %v85
  %v224 = vpop.f32.mrf.mxu0
  %v225 = vadd.f32 %v42, %v224
  %v226 = vpop.f32.mrf.mxu0
  %227 = vmatprep.mubr.f32.mxu0 0.0
  %228 = vmatmul.mubr.f32.gmra.mxu0 %v88
  %v229 = vpop.f32.mrf.mxu0
  %v230 = vadd.f32 %v42, %v229
  %v231 = vpop.f32.mrf.mxu0
  %232 = vmatprep.mubr.f32.mxu0 0.0
  %233 = vmatmul.mubr.f32.gmra.mxu0 %v91
  %v234 = vpop.f32.mrf.mxu0
  %v235 = vadd.f32 %v42, %v234
  %v236 = vpop.f32.mrf.mxu0
  %237 = vdwg.mxu0
  %v238 = vmax.f32 %v160, 0.0
  %v239 = vmax.f32 %v165, 0.0
  %v240 = vmax.f32 %v170, 0.0
  %v241 = vmax.f32 %v175, 0.0
  %v242 = vmax.f32 %v180, 0.0
  %v243 = vmax.f32 %v185, 0.0
  %v244 = vmax.f32 %v190, 0.0
  %v245 = vmax.f32 %v195, 0.0
  %v246 = vmax.f32 %v200, 0.0
  %v247 = vmax.f32 %v205, 0.0
  %v248 = vmax.f32 %v210, 0.0
  %v249 = vmax.f32 %v215, 0.0
  %v250 = vmax.f32 %v220, 0.0
  %v251 = vmax.f32 %v225, 0.0
  %v252 = vmax.f32 %v230, 0.0
  %v253 = vmax.f32 %v235, 0.0
  %v254 = vld [vmem:[%s3] sm:$0xff]
  %v255 = vld [vmem:[%s3 + $0x8] sm:$0xff]
  %v256 = vld [vmem:[%s3 + $0x10] sm:$0xff]
  %v257 = vld [vmem:[%s3 + $0x18] sm:$0xff]
  %v258 = vld [vmem:[%s4] sm:$0x1]
  %v260 = vlaneseq
  %v261 = vshrl.u32 %v260, 7
  %v262 = vsub.s32 0, %v261
  %v263 = vrot.slane %v258, %v262
  %vm265 = vcmask 261120
  %v267 = vsel %vm265, %v238, 0
  %v270 = vsel %vm265, %v239, 0
  %v273 = vsel %vm265, %v240, 0
  %v276 = vsel %vm265, %v241, 0
  %v279 = vsel %vm265, %v242, 0
  %v282 = vsel %vm265, %v243, 0
  %v285 = vsel %vm265, %v244, 0
  %v288 = vsel %vm265, %v245, 0
  %v291 = vsel %vm265, %v246, 0
  %v294 = vsel %vm265, %v247, 0
  %v297 = vsel %vm265, %v248, 0
  %v300 = vsel %vm265, %v249, 0
  %v303 = vsel %vm265, %v250, 0
  %v306 = vsel %vm265, %v251, 0
  %v309 = vsel %vm265, %v252, 0
  %v312 = vsel %vm265, %v253, 0
  %314 = vmatprep.subr.mxu0 0.0
  %315 = vmatpush1.msra.mxu0 0.0
  %316 = vmatprep.subr.mxu0 0.0
  %317 = vmatpush1.msra.mxu0 0.0
  %318 = vmatprep.subr.mxu0 0.0
  %319 = vmatpush1.msra.mxu0 0.0
  %320 = vmatprep.subr.mxu0 0.0
  %321 = vmatpush1.msra.mxu0 0.0
  %322 = vmatprep.subr.mxu0 0.0
  %323 = vmatpush1.msra.mxu0 0.0
  %324 = vmatprep.subr.mxu0 0.0
  %325 = vmatpush1.msra.mxu0 0.0
  %326 = vmatprep.subr.mxu0 0.0
  %327 = vmatpush1.msra.mxu0 0.0
  %328 = vmatprep.subr.mxu0 0.0
  %329 = vmatpush1.msra.mxu0 0.0
  %330 = vmatprep.subr.mxu0 0.0
  %331 = vmatpush1.msra.mxu0 0.0
  %332 = vmatprep.subr.mxu0 0.0
  %333 = vmatpush1.msra.mxu0 0.0
  %334 = vmatprep.subr.mxu0 0.0
  %335 = vmatpush1.msra.mxu0 0.0
  %336 = vmatprep.subr.mxu0 0.0
  %337 = vmatpush1.msra.mxu0 0.0
  %338 = vmatprep.subr.mxu0 0.0
  %339 = vmatpush1.msra.mxu0 %v257
  %340 = vmatprep.subr.mxu0 0.0
  %341 = vmatpush1.msra.mxu0 %v256
  %342 = vmatprep.subr.mxu0 0.0
  %343 = vmatpush1.msra.mxu0 %v255
  %344 = vmatprep.subr.mxu0 0.0
  %345 = vmatpush1.msra.mxu0 %v254
  %346 = vmatprep.subr.mxu0 0.0
  %347 = vmatpush2.msra.mxu0 0.0
  %348 = vmatprep.subr.mxu0 0.0
  %349 = vmatpush2.msra.mxu0 0.0
  %350 = vmatprep.subr.mxu0 0.0
  %351 = vmatpush2.msra.mxu0 0.0
  %352 = vmatprep.subr.mxu0 0.0
  %353 = vmatpush2.msra.mxu0 0.0
  %354 = vmatprep.subr.mxu0 0.0
  %355 = vmatpush2.msra.mxu0 0.0
  %356 = vmatprep.subr.mxu0 0.0
  %357 = vmatpush2.msra.mxu0 0.0
  %358 = vmatprep.subr.mxu0 0.0
  %359 = vmatpush2.msra.mxu0 0.0
  %360 = vmatprep.subr.mxu0 0.0
  %361 = vmatpush2.msra.mxu0 0.0
  %362 = vmatprep.subr.mxu0 0.0
  %363 = vmatpush2.msra.mxu0 0.0
  %364 = vmatprep.subr.mxu0 0.0
  %365 = vmatpush2.msra.mxu0 0.0
  %366 = vmatprep.subr.mxu0 0.0
  %367 = vmatpush2.msra.mxu0 0.0
  %368 = vmatprep.subr.mxu0 0.0
  %369 = vmatpush2.msra.mxu0 0.0
  %370 = vmatprep.subr.mxu0 0.0
  %371 = vmatpush2.msra.mxu0 0.0
  %372 = vmatprep.subr.mxu0 0.0
  %373 = vmatpush2.msra.mxu0 0.0
  %374 = vmatprep.subr.mxu0 0.0
  %375 = vmatpush2.msra.mxu0 0.0
  %376 = vmatprep.subr.mxu0 0.0
  %377 = vmatpush2.msra.mxu0 0.0
  %378 = vmatprep.mubr.f32.mxu0 0.0
  %379 = vmatmul.mubr.f32.gmra.mxu0 %v267
  %v380 = vpop.f32.mrf.mxu0
  %v381 = vadd.f32 %v263, %v380
  %v382 = vpop.f32.mrf.mxu0
  %383 = vmatprep.mubr.f32.mxu0 0.0
  %384 = vmatmul.mubr.f32.gmra.mxu0 %v270
  %v385 = vpop.f32.mrf.mxu0
  %v386 = vadd.f32 %v263, %v385
  %v387 = vpop.f32.mrf.mxu0
  %388 = vmatprep.mubr.f32.mxu0 0.0
  %389 = vmatmul.mubr.f32.gmra.mxu0 %v273
  %v390 = vpop.f32.mrf.mxu0
  %v391 = vadd.f32 %v263, %v390
  %v392 = vpop.f32.mrf.mxu0
  %393 = vmatprep.mubr.f32.mxu0 0.0
  %394 = vmatmul.mubr.f32.gmra.mxu0 %v276
  %v395 = vpop.f32.mrf.mxu0
  %v396 = vadd.f32 %v263, %v395
  %v397 = vpop.f32.mrf.mxu0
  %398 = vmatprep.mubr.f32.mxu0 0.0
  %399 = vmatmul.mubr.f32.gmra.mxu0 %v279
  %v400 = vpop.f32.mrf.mxu0
  %v401 = vadd.f32 %v263, %v400
  %v402 = vpop.f32.mrf.mxu0
  %403 = vmatprep.mubr.f32.mxu0 0.0
  %404 = vmatmul.mubr.f32.gmra.mxu0 %v282
  %v405 = vpop.f32.mrf.mxu0
  %v406 = vadd.f32 %v263, %v405
  %v407 = vpop.f32.mrf.mxu0
  %408 = vmatprep.mubr.f32.mxu0 0.0
  %409 = vmatmul.mubr.f32.gmra.mxu0 %v285
  %v410 = vpop.f32.mrf.mxu0
  %v411 = vadd.f32 %v263, %v410
  %v412 = vpop.f32.mrf.mxu0
  %413 = vmatprep.mubr.f32.mxu0 0.0
  %414 = vmatmul.mubr.f32.gmra.mxu0 %v288
  %v415 = vpop.f32.mrf.mxu0
  %v416 = vadd.f32 %v263, %v415
  %v417 = vpop.f32.mrf.mxu0
  %418 = vmatprep.mubr.f32.mxu0 0.0
  %419 = vmatmul.mubr.f32.gmra.mxu0 %v291
  %v420 = vpop.f32.mrf.mxu0
  %v421 = vadd.f32 %v263, %v420
  %v422 = vpop.f32.mrf.mxu0
  %423 = vmatprep.mubr.f32.mxu0 0.0
  %424 = vmatmul.mubr.f32.gmra.mxu0 %v294
  %v425 = vpop.f32.mrf.mxu0
  %v426 = vadd.f32 %v263, %v425
  %v427 = vpop.f32.mrf.mxu0
  %428 = vmatprep.mubr.f32.mxu0 0.0
  %429 = vmatmul.mubr.f32.gmra.mxu0 %v297
  %v430 = vpop.f32.mrf.mxu0
  %v431 = vadd.f32 %v263, %v430
  %v432 = vpop.f32.mrf.mxu0
  %433 = vmatprep.mubr.f32.mxu0 0.0
  %434 = vmatmul.mubr.f32.gmra.mxu0 %v300
  %v435 = vpop.f32.mrf.mxu0
  %v436 = vadd.f32 %v263, %v435
  %v437 = vpop.f32.mrf.mxu0
  %438 = vmatprep.mubr.f32.mxu0 0.0
  %439 = vmatmul.mubr.f32.gmra.mxu0 %v303
  %v440 = vpop.f32.mrf.mxu0
  %v441 = vadd.f32 %v263, %v440
  %v442 = vpop.f32.mrf.mxu0
  %443 = vmatprep.mubr.f32.mxu0 0.0
  %444 = vmatmul.mubr.f32.gmra.mxu0 %v306
  %v445 = vpop.f32.mrf.mxu0
  %v446 = vadd.f32 %v263, %v445
  %v447 = vpop.f32.mrf.mxu0
  %448 = vmatprep.mubr.f32.mxu0 0.0
  %449 = vmatmul.mubr.f32.gmra.mxu0 %v309
  %v450 = vpop.f32.mrf.mxu0
  %v451 = vadd.f32 %v263, %v450
  %v452 = vpop.f32.mrf.mxu0
  %453 = vmatprep.mubr.f32.mxu0 0.0
  %454 = vmatmul.mubr.f32.gmra.mxu0 %v312
  %v455 = vpop.f32.mrf.mxu0
  %v456 = vadd.f32 %v263, %v455
  %v457 = vpop.f32.mrf.mxu0
  %458 = vdwg.mxu0
  %v459 = vmax.f32 %v381, 0.0
  %v460 = vmax.f32 %v386, 0.0
  %v461 = vmax.f32 %v391, 0.0
  %v462 = vmax.f32 %v396, 0.0
  %v463 = vmax.f32 %v401, 0.0
  %v464 = vmax.f32 %v406, 0.0
  %v465 = vmax.f32 %v411, 0.0
  %v466 = vmax.f32 %v416, 0.0
  %v467 = vmax.f32 %v421, 0.0
  %v468 = vmax.f32 %v426, 0.0
  %v469 = vmax.f32 %v431, 0.0
  %v470 = vmax.f32 %v436, 0.0
  %v471 = vmax.f32 %v441, 0.0
  %v472 = vmax.f32 %v446, 0.0
  %v473 = vmax.f32 %v451, 0.0
  %v474 = vmax.f32 %v456, 0.0
  %v475 = vsel %vm44, %v459, -inf
  %476 = vmax.xlane.f32.xlu0 %v475
  %v477 = vpop.xlane.xlu0 %476
  %v478 = vsel %vm44, %v460, -inf
  %479 = vmax.xlane.f32.xlu0 %v478
  %v480 = vpop.xlane.xlu0 %479
  %v481 = vsel %vm44, %v461, -inf
  %482 = vmax.xlane.f32.xlu0 %v481
  %v483 = vpop.xlane.xlu0 %482
  %v484 = vsel %vm44, %v462, -inf
  %485 = vmax.xlane.f32.xlu0 %v484
  %v486 = vpop.xlane.xlu0 %485
  %v487 = vsel %vm44, %v463, -inf
  %488 = vmax.xlane.f32.xlu0 %v487
  %v489 = vpop.xlane.xlu0 %488
  %v490 = vsel %vm44, %v464, -inf
  %491 = vmax.xlane.f32.xlu0 %v490
  %v492 = vpop.xlane.xlu0 %491
  %v493 = vsel %vm44, %v465, -inf
  %494 = vmax.xlane.f32.xlu0 %v493
  %v495 = vpop.xlane.xlu0 %494
  %v496 = vsel %vm44, %v466, -inf
  %497 = vmax.xlane.f32.xlu0 %v496
  %v498 = vpop.xlane.xlu0 %497
  %v499 = vsel %vm44, %v467, -inf
  %500 = vmax.xlane.f32.xlu0 %v499
  %v501 = vpop.xlane.xlu0 %500
  %v502 = vsel %vm44, %v468, -inf
  %503 = vmax.xlane.f32.xlu0 %v502
  %v504 = vpop.xlane.xlu0 %503
  %v505 = vsel %vm44, %v469, -inf
  %506 = vmax.xlane.f32.xlu0 %v505
  %v507 = vpop.xlane.xlu0 %506
  %v508 = vsel %vm44, %v470, -inf
  %509 = vmax.xlane.f32.xlu0 %v508
  %v510 = vpop.xlane.xlu0 %509
  %v511 = vsel %vm44, %v471, -inf
  %512 = vmax.xlane.f32.xlu0 %v511
  %v513 = vpop.xlane.xlu0 %512
  %v514 = vsel %vm44, %v472, -inf
  %515 = vmax.xlane.f32.xlu0 %v514
  %v516 = vpop.xlane.xlu0 %515
  %v517 = vsel %vm44, %v473, -inf
  %518 = vmax.xlane.f32.xlu0 %v517
  %v519 = vpop.xlane.xlu0 %518
  %v520 = vsel %vm44, %v474, -inf
  %521 = vmax.xlane.f32.xlu0 %v520
  %v522 = vpop.xlane.xlu0 %521
  %v523 = vsub.f32 %v459, %v477
  %v524 = vsub.f32 %v460, %v480
  %v525 = vsub.f32 %v461, %v483
  %v526 = vsub.f32 %v462, %v486
  %v527 = vsub.f32 %v463, %v489
  %v528 = vsub.f32 %v464, %v492
  %v529 = vsub.f32 %v465, %v495
  %v530 = vsub.f32 %v466, %v498
  %v531 = vsub.f32 %v467, %v501
  %v532 = vsub.f32 %v468, %v504
  %v533 = vsub.f32 %v469, %v507
  %v534 = vsub.f32 %v470, %v510
  %v535 = vsub.f32 %v471, %v513
  %v536 = vsub.f32 %v472, %v516
  %v537 = vsub.f32 %v473, %v519
  %v538 = vsub.f32 %v474, %v522
  %v539 = vmul.f32 %v523, 1.442695
  %v540 = vpow.pop %v539
  %v541 = vmul.f32 %v524, 1.442695
  %v542 = vpow.pop %v541
  %v543 = vmul.f32 %v525, 1.442695
  %v544 = vpow.pop %v543
  %v545 = vmul.f32 %v526, 1.442695
  %v546 = vpow.pop %v545
  %v547 = vmul.f32 %v527, 1.442695
  %v548 = vpow.pop %v547
  %v549 = vmul.f32 %v528, 1.442695
  %v550 = vpow.pop %v549
  %v551 = vmul.f32 %v529, 1.442695
  %v552 = vpow.pop %v551
  %v553 = vmul.f32 %v530, 1.442695
  %v554 = vpow.pop %v553
  %v555 = vmul.f32 %v531, 1.442695
  %v556 = vpow.pop %v555
  %v557 = vmul.f32 %v532, 1.442695
  %v558 = vpow.pop %v557
  %v559 = vmul.f32 %v533, 1.442695
  %v560 = vpow.pop %v559
  %v561 = vmul.f32 %v534, 1.442695
  %v562 = vpow.pop %v561
  %v563 = vmul.f32 %v535, 1.442695
  %v564 = vpow.pop %v563
  %v565 = vmul.f32 %v536, 1.442695
  %v566 = vpow.pop %v565
  %v567 = vmul.f32 %v537, 1.442695
  %v568 = vpow.pop %v567
  %v569 = vmul.f32 %v538, 1.442695
  %v570 = vpow.pop %v569
  %v571 = vsel %vm44, %v540, 0.0
  %572 = vadd.xlane.f32.xlu0 %v571
  %v573 = vpop.xlane.xlu0 %572
  %v574 = vsel %vm44, %v542, 0.0
  %575 = vadd.xlane.f32.xlu0 %v574
  %v576 = vpop.xlane.xlu0 %575
  %v577 = vsel %vm44, %v544, 0.0
  %578 = vadd.xlane.f32.xlu0 %v577
  %v579 = vpop.xlane.xlu0 %578
  %v580 = vsel %vm44, %v546, 0.0
  %581 = vadd.xlane.f32.xlu0 %v580
  %v582 = vpop.xlane.xlu0 %581
  %v583 = vsel %vm44, %v548, 0.0
  %584 = vadd.xlane.f32.xlu0 %v583
  %v585 = vpop.xlane.xlu0 %584
  %v586 = vsel %vm44, %v550, 0.0
  %587 = vadd.xlane.f32.xlu0 %v586
  %v588 = vpop.xlane.xlu0 %587
  %v589 = vsel %vm44, %v552, 0.0
  %590 = vadd.xlane.f32.xlu0 %v589
  %v591 = vpop.xlane.xlu0 %590
  %v592 = vsel %vm44, %v554, 0.0
  %593 = vadd.xlane.f32.xlu0 %v592
  %v594 = vpop.xlane.xlu0 %593
  %v595 = vsel %vm44, %v556, 0.0
  %596 = vadd.xlane.f32.xlu0 %v595
  %v597 = vpop.xlane.xlu0 %596
  %v598 = vsel %vm44, %v558, 0.0
  %599 = vadd.xlane.f32.xlu0 %v598
  %v600 = vpop.xlane.xlu0 %599
  %v601 = vsel %vm44, %v560, 0.0
  %602 = vadd.xlane.f32.xlu0 %v601
  %v603 = vpop.xlane.xlu0 %602
  %v604 = vsel %vm44, %v562, 0.0
  %605 = vadd.xlane.f32.xlu0 %v604
  %v606 = vpop.xlane.xlu0 %605
  %v607 = vsel %vm44, %v564, 0.0
  %608 = vadd.xlane.f32.xlu0 %v607
  %v609 = vpop.xlane.xlu0 %608
  %v610 = vsel %vm44, %v566, 0.0
  %611 = vadd.xlane.f32.xlu0 %v610
  %v612 = vpop.xlane.xlu0 %611
  %v613 = vsel %vm44, %v568, 0.0
  %614 = vadd.xlane.f32.xlu0 %v613
  %v615 = vpop.xlane.xlu0 %614
  %v616 = vsel %vm44, %v570, 0.0
  %617 = vadd.xlane.f32.xlu0 %v616
  %v618 = vpop.xlane.xlu0 %617
  %v619 = vrcp.pop %v573
  %v620 = vrcp.pop %v576
  %v621 = vrcp.pop %v579
  %v622 = vrcp.pop %v582
  %v623 = vrcp.pop %v585
  %v624 = vrcp.pop %v588
  %v625 = vrcp.pop %v591
  %v626 = vrcp.pop %v594
  %v627 = vrcp.pop %v597
  %v628 = vrcp.pop %v600
  %v629 = vrcp.pop %v603
  %v630 = vrcp.pop %v606
  %v631 = vrcp.pop %v609
  %v632 = vrcp.pop %v612
  %v633 = vrcp.pop %v615
  %v634 = vrcp.pop %v618
  %v635 = vmul.f32 %v540, %v619
  %v636 = vmul.f32 %v542, %v620
  %v637 = vmul.f32 %v544, %v621
  %v638 = vmul.f32 %v546, %v622
  %v639 = vmul.f32 %v548, %v623
  %v640 = vmul.f32 %v550, %v624
  %v641 = vmul.f32 %v552, %v625
  %v642 = vmul.f32 %v554, %v626
  %v643 = vmul.f32 %v556, %v627
  %v644 = vmul.f32 %v558, %v628
  %v645 = vmul.f32 %v560, %v629
  %v646 = vmul.f32 %v562, %v630
  %v647 = vmul.f32 %v564, %v631
  %v648 = vmul.f32 %v566, %v632
  %v649 = vmul.f32 %v568, %v633
  %v650 = vmul.f32 %v570, %v634
  %651 = vxpose.xlu0.b32.start [1/16] %v635, 128
  %652 = vxpose.xlu0.b32.cont [2/16] %v636, 128
  %653 = vxpose.xlu0.b32.cont [3/16] %v637, 128
  %654 = vxpose.xlu0.b32.cont [4/16] %v638, 128
  %655 = vxpose.xlu0.b32.cont [5/16] %v639, 128
  %656 = vxpose.xlu0.b32.cont [6/16] %v640, 128
  %657 = vxpose.xlu0.b32.cont [7/16] %v641, 128
  %658 = vxpose.xlu0.b32.cont [8/16] %v642, 128
  %659 = vxpose.xlu0.b32.cont [9/16] %v643, 128
  %660 = vxpose.xlu0.b32.cont [10/16] %v644, 128
  %661 = vxpose.xlu0.b32.cont [11/16] %v645, 128
  %662 = vxpose.xlu0.b32.cont [12/16] %v646, 128
  %663 = vxpose.xlu0.b32.cont [13/16] %v647, 128
  %664 = vxpose.xlu0.b32.cont [14/16] %v648, 128
  %665 = vxpose.xlu0.b32.cont [15/16] %v649, 128
  %666 = vxpose.xlu0.b32.end [16/16] %v650, 128
  %v667 = vpop.trf.xlu0
  %v668 = vpop.trf.xlu0
  %v669 = vpop.trf.xlu0
  %v670 = vpop.trf.xlu0
  %v671 = vpop.trf.xlu0
  %v672 = vpop.trf.xlu0
  %v673 = vpop.trf.xlu0
  %v674 = vpop.trf.xlu0
  %v675 = vpop.trf.xlu0
  %v676 = vpop.trf.xlu0
  %v677 = vpop.trf.xlu0
  %v678 = vpop.trf.xlu0
  %v679 = vpop.trf.xlu0
  %v680 = vpop.trf.xlu0
  %v681 = vpop.trf.xlu0
  %v682 = vpop.trf.xlu0
  %683 = vst [vmem:[%s5] sm:$0xff] %v667
  %v684 = vsub.f32 1.0, %v667
  %s685 = scalar_lea.vmem %s5, 8
  %686 = vst [vmem:[%s685] sm:$0xff] %v684
  // Predicated region
  $region22: #{kernel_mask_encoder.1} parent=0 // pred_check
    _
  $region23: #{kernel_mask_encoder.1} parent=0 // pred_check_branch
    %688 = sbr.rel (0) target = $region25
  $region24: #{kernel_mask_encoder.1} parent=0 // pred_region
    _
  $region25: #{kernel_mask_encoder.1} parent=0 // pred_fallthru
    _
  // Predicated region
  $region26: #{kernel_mask_encoder.1} parent=0 // pred_check
    _
  $region27: #{kernel_mask_encoder.1} parent=0 // pred_check_branch
    %690 = sbr.rel (0) target = $region29
  $region28: #{kernel_mask_encoder.1} parent=0 // pred_region
    _
  $region29: #{kernel_mask_encoder.1} parent=0 // pred_fallthru
    _

</llo_original>
